<compile_context>
chip_gen: v7x
topology: tpu7x:2x2x1
jax: 0.10.0
libtpu: 0.0.40
codegen_flags: <defaults>
</compile_context>

<pallas_src>
import jax
import jax.numpy as jnp
from jax.experimental import pallas as pl
from jax.experimental.pallas import tpu as pltpu

CLASS_NUM = 10


def _round_up(x, m):
    return ((x + m - 1) // m) * m


def _cpad(c):
    return max(8, _round_up(c, 8))


# --------------------------------------------------------------------------------------
# One-time probe (run eagerly, outside jit) that pins down pltpu.roll's shift convention
# so the in-kernel lattice shifts are provably in the right direction on any jax version.
# --------------------------------------------------------------------------------------
_ROLL_NUMPY = None


def _roll_follows_numpy():
    """True iff pltpu.roll matches jnp.roll semantics (result[i] = x[(i - shift) % n])."""
    global _ROLL_NUMPY
    if _ROLL_NUMPY is None:
        n = 256

        def k(x_ref, o_ref):
            o_ref[...] = pltpu.roll(x_ref[...], shift=1, axis=1)

        x = jnp.broadcast_to(jnp.arange(n, dtype=jnp.float32), (8, n))
        y = pl.pallas_call(k, out_shape=jax.ShapeDtypeStruct((8, n), jnp.float32))(x)
        _ROLL_NUMPY = bool(float(jax.device_get(y)[0, 0]) == float(n - 1))
    return _ROLL_NUMPY


# --------------------------------------------------------------------------------------
# Fused forward
# --------------------------------------------------------------------------------------
def make_nn_forward(roll_numpy):
    def nn_forward(x, params):
        w1, w2, w3, w4 = params
        B, cin0, H, W = x.shape
        NP = _round_up(H * W, 128)          # per-image flat spatial length (lane aligned)
        NT = B * NP                         # total lane extent (batch folded onto lanes)

        # channel paddings (sublane multiples of 8); zero-padded channels stay exactly 0
        c0 = _cpad(cin0)
        c1 = _cpad(w1.shape[0])
        c2 = _cpad(w2.shape[0])
        c3 = _cpad(w3.shape[0])
        c4 = _cpad(w4.shape[0])

        # ---- static stage geometry (plain python ints, resolved at trace time) --------
        strides, h, w_cur, s = [], H, W, 1
        for _ in range(3):
            strides.append(s)               # lattice stride of this stage's input
            h, w_cur = (h - 2) // 2, (w_cur - 2) // 2   # 3x3 VALID conv + 2x2 pool (floor)
            s *= 2
        # valid flat offsets of the final feature map (1x1 for a 28x28 input)
        final_lattice = [s * (i * W + j) for i in range(h) for j in range(w_cur)]

        # ---- tiny one-time host-side layout prep (a handful of XLA ops) ---------------
        xl = jnp.pad(x.reshape(B, cin0, H * W).astype(jnp.float32),
                     ((0, 0), (0, c0 - cin0), (0, NP - H * W)))
        xl = jnp.transpose(xl, (1, 0, 2)).reshape(c0, NT)        # (c0, B*NP) lane-dense

        def pack3x3(w, cin_p, cout_p):
            # (Cout, Cin, 3, 3) -> (Cout_pad, 9*Cin_pad), K index = (ky*3+kx)*Cin_pad + ci
            co, ci = w.shape[0], w.shape[1]
            wt = jnp.transpose(w, (0, 2, 3, 1)).astype(jnp.float32)
            wt = jnp.pad(wt, ((0, cout_p - co), (0, 0), (0, 0), (0, cin_p - ci)))
            return wt.reshape(cout_p, 9 * cin_p)

        W1 = pack3x3(w1, c0, c1)                                  # (16,  72)
        W2 = pack3x3(w2, c1, c2)                                  # (24, 144)
        W3 = pack3x3(w3, c2, c3)                                  # (40, 216)
        W4 = jnp.pad(w4.reshape(w4.shape[0], w4.shape[1]).astype(jnp.float32),
                     ((0, c4 - w4.shape[0]), (0, c3 - w4.shape[1])))   # (16, 40)

        # ---- the fused kernel ----------------------------------------------------------
        def shift_up(v, s_):
            # result[:, n] = v[:, (n + s_) % NT]   (probe-resolved roll convention)
            if s_ == 0:
                return v
            amt = (NT - s_) if roll_numpy else s_
            return pltpu.roll(v, shift=amt, axis=1)

        def kernel(x_ref, w1_ref, w2_ref, w3_ref, w4_ref, o_ref):
            def conv_relu_pool(act, w_ref_s, stride):
                # 9 conv taps = lane shifts of the resident activation slab (XLU), stacked
                # along K so the whole conv is ONE MXU matmul with a lane-dense N = B*NP.
                taps = [shift_up(act, stride * (ky * W + kx))
                        for ky in range(3) for kx in range(3)]
                patches = jnp.concatenate(taps, axis=0)            # (9*cin_p, NT)
                z = jnp.dot(w_ref_s[...], patches,
                            preferred_element_type=jnp.float32)    # (cout_p, NT)
                z = jnp.maximum(z, 0.0)                            # ReLU (commutes w/ max)
                pooled = z                                         # 2x2 max-pool = max of
                for ps in (stride, stride * W, stride * (W + 1)):  # 4 lane-shifted copies
                    pooled = jnp.maximum(pooled, shift_up(z, ps))
                return pooled                                      # lattice stride doubles

            a = x_ref[...]                                         # (c0, NT), stride-1
            a = conv_relu_pool(a, w1_ref, strides[0])              # (c1, NT), stride-2
            a = conv_relu_pool(a, w2_ref, strides[1])              # (c2, NT), stride-4
            a = conv_relu_pool(a, w3_ref, strides[2])              # (c3, NT), stride-8

            # AdaptiveAvgPool2d((1,1)): average over the valid final lattice (= {0} here)
            acc = a
            for p in final_lattice[1:]:
                acc = acc + shift_up(a, p)
            feat = acc * (1.0 / float(len(final_lattice)))         # (c3, NT)

            # 1x1-conv head on one aligned 128-lane block per batch element (col 0 is real)
            blk = jnp.concatenate(
                [feat[:, b * NP:b * NP + 128] for b in range(B)], axis=1)  # (c3, B*128)
            o_ref[...] = jnp.dot(w4_ref[...], blk,
                                 preferred_element_type=jnp.float32)       # (c4, B*128)

        out = pl.pallas_call(
            kernel,
            out_shape=jax.ShapeDtypeStruct((c4, B * 128), jnp.float32),
            grid=(1,),
            in_specs=[pl.BlockSpec((c0, NT), lambda i: (0, 0)),
                      pl.BlockSpec(W1.shape, lambda i: (0, 0)),
                      pl.BlockSpec(W2.shape, lambda i: (0, 0)),
                      pl.BlockSpec(W3.shape, lambda i: (0, 0)),
                      pl.BlockSpec(W4.shape, lambda i: (0, 0))],
            out_specs=pl.BlockSpec((c4, B * 128), lambda i: (0, 0)),
            compiler_params=pltpu.CompilerParams(
                dimension_semantics=("arbitrary",)),
        )(xl, W1, W2, W3, W4)

        # logits for batch b live in column b*128; real classes in the first rows
        return jnp.transpose(out[:w4.shape[0], ::128])             # (B, class_num)

    return nn_forward


# --------------------------------------------------------------------------------------
# Pure-JAX reference (mirrors the PyTorch module exactly)
# --------------------------------------------------------------------------------------
def reference_forward(x, params):
    w1, w2, w3, w4 = params

    def conv(v, w):
        return jax.lax.conv_general_dilated(
            v, w, (1, 1), 'VALID', dimension_numbers=('NCHW', 'OIHW', 'NCHW'))

    def pool(v):
        return jax.lax.reduce_window(v, -jnp.inf, jax.lax.max,
                                     (1, 1, 2, 2), (1, 1, 2, 2), 'VALID')

    y = pool(jax.nn.relu(conv(x, w1)))
    y = pool(jax.nn.relu(conv(y, w2)))
    y = pool(jax.nn.relu(conv(y, w3)))
    y = jnp.mean(y, axis=(2, 3), keepdims=True)
    y = conv(y, w4)
    return y.reshape(y.shape[0], -1)


if __name__ == "__main__":
    key = jax.random.PRNGKey(0)
    kx_, k1, k2, k3, k4 = jax.random.split(key, 5)
    B, H, W = 2, 28, 28                       # Conv2d(1,10,3) => single-channel input
    x = jax.random.normal(kx_, (B, 1, H, W), dtype=jnp.float32)
    # deterministic synthetic weights (shapes from nn.Conv2d in __init__, bias=False)
    w1 = jax.random.normal(k1, (10, 1, 3, 3), dtype=jnp.float32) * 0.30
    w2 = jax.random.normal(k2, (20, 10, 3, 3), dtype=jnp.float32) * 0.10
    w3 = jax.random.normal(k3, (40, 20, 3, 3), dtype=jnp.float32) * 0.07
    w4 = jax.random.normal(k4, (CLASS_NUM, 40, 1, 1), dtype=jnp.float32) * 0.15
    params = (w1, w2, w3, w4)

    nn_forward = make_nn_forward(_roll_follows_numpy())
    out = jax.jit(nn_forward)(x, params)
    out = jax.block_until_ready(out)
    assert out.shape == (B, CLASS_NUM)

    ref = reference_forward(x, params)
    assert jnp.allclose(out, ref, rtol=1e-3, atol=1e-3), (out, ref)
    print("KERNEL_OK")
</pallas_src>

<mosaic_0001>
module attributes {stable_mosaic.version = 11 : i64} {
  func.func @k(%arg0: memref<8x256xf32, #tpu.memory_space<vmem>>, %arg1: memref<8x256xf32, #tpu.memory_space<vmem>>) attributes {dimension_semantics = [], scalar_prefetch = 0 : i64, scratch_operands = 0 : i64, tpu.core_type = #tpu.core_type<tc>} {
    %c0 = arith.constant 0 : index
    %c0_0 = arith.constant 0 : index
    %0 = vector.load %arg0[%c0, %c0_0] : memref<8x256xf32, #tpu.memory_space<vmem>>, vector<8x256xf32>
    %c1_i32 = arith.constant 1 : i32
    %1 = tpu.dynamic_rotate %0 by %c1_i32 dim 1 : vector<8x256xf32>, i32 -> vector<8x256xf32>
    %c0_1 = arith.constant 0 : index
    %c0_2 = arith.constant 0 : index
    %2 = vector.load %arg1[%c0_1, %c0_2] : memref<8x256xf32, #tpu.memory_space<vmem>>, vector<8x256xf32>
    tpu.vector_store %arg1[%c0_1, %c0_2], %1 {strides = array<i32>} : memref<8x256xf32, #tpu.memory_space<vmem>>, vector<8x256xf32>,
    return
  }
}

</mosaic_0001>

<llo_original>
// kernel: tpu_custom_call.1
$region0: #{tpu_custom_call.1}
  #allocation0 [shape = 'u32[]', space=smem, size = 0x4, offset = 0x4, fixed_abs, tag = 'smem constant byte address 0x4 - core index']
  #allocation1 [shape = 'u32[144,128]{1,0:T(1,128)}', space=vmem, size = 0x12000, scoped, tag = 'internal scratch']
  %s0 = inlined_call_operand.hbm [shape: f32[8,256], index: 0, kind: input, shape index: {}]
  %s1 = inlined_call_operand.hbm [shape: f32[8,256], index: 1, kind: output, shape index: {}]
  %s2 = sld [smem:[#allocation0]]
  $region18: #{tpu_custom_call.1} parent=0
    _
  %s4 = ssub.s32 1, %s2
  %s5 = scalar_select 0, %s4, %s2
  $region1: #{tpu_custom_call.1} parent=0
    #allocation2 [shape = 'u8[8192]{0}', space=vmem, size = 0x2000, scoped, tag = 'input window, operand 0, single buffered']
    #allocation3 [shape = 's32[1]{0}', space=sflag, size = 0x4, scoped, tag = 'scoped memory for tpu_custom_call.1']
    #allocation4 [shape = 's32[1]{0}', space=sflag, size = 0x4, scoped, tag = 'scoped memory for tpu_custom_call.1']
    #allocation5 [shape = 'u8[8192]{0}', space=vmem, size = 0x2000, scoped, tag = 'output window, operand 0, single buffered']
    %6 = vsyncpa [#allocation3], 0
    %7 = vsyncpa [#allocation4], 0
    // Predicated region
    $region2: #{tpu_custom_call.1} parent=1 // pred_check
      _
    $region3: #{tpu_custom_call.1} parent=1 // pred_check_branch
      %9 = sbr.rel (0) target = $region5
    $region4: #{tpu_custom_call.1} parent=1 // pred_region
      %s11 = ssub.s32 256, 256
      %12 = vsyncadd [#allocation3], %s11
      %s14 = sshll.u32 [#allocation2], 4
      %s15 = int_to_ptr.vmem [resolvable:$true] %s14
      %17 = dma.hbm_to_vmem [thread:$0]  %s0, 256, %s15, [#allocation3]
    $region5: #{tpu_custom_call.1} parent=1 // pred_fallthru
      _
    // Predicated region
    $region6: #{tpu_custom_call.1} parent=1 // pred_check
      _
    $region7: #{tpu_custom_call.1} parent=1 // pred_check_branch
      %19 = sbr.rel (0) target = $region9
    $region8: #{tpu_custom_call.1} parent=1 // pred_region
      %20 = dma.done [#allocation3], 256
    $region9: #{tpu_custom_call.1} parent=1 // pred_fallthru
      _
    %v21 = vld [vmem:[#allocation2] sm:$0xff]
    %v22 = vld [vmem:[#allocation2 + $0x8] sm:$0xff]
    %23 = vrot.lane.b32.xlu0 %v21, 1
    %v24 = vpop.permute.xlu0 %23
    %25 = vrot.lane.b32.xlu0 %v22, 1
    %v26 = vpop.permute.xlu0 %25
    %v27 = vlaneseq
    %v28 = vand.u32 %v27, 127
    %vm29 = vcmp.lt.s32.totalorder %v28, 1
    %v30 = vsel %vm29, %v24, %v26
    %v31 = vsel %vm29, %v26, %v24
    %32 = vst [vmem:[#allocation5] sm:$0xff] %v31
    %33 = vst [vmem:[#allocation5 + $0x8] sm:$0xff] %v30
    // Predicated region
    $region10: #{tpu_custom_call.1} parent=1 // pred_check
      _
    $region11: #{tpu_custom_call.1} parent=1 // pred_check_branch
      %35 = sbr.rel (0) target = $region13
    $region12: #{tpu_custom_call.1} parent=1 // pred_region
      %s37 = ssub.s32 256, 256
      %38 = vsyncadd [#allocation4], %s37
      %s40 = sshll.u32 [#allocation5], 4
      %s41 = int_to_ptr.vmem [resolvable:$true] %s40
      %43 = dma.vmem_to_hbm [thread:$0]  %s41, 256, %s1, [#allocation4]
    $region13: #{tpu_custom_call.1} parent=1 // pred_fallthru
      _
    // Predicated region
    $region14: #{tpu_custom_call.1} parent=1 // pred_check
      _
    $region15: #{tpu_custom_call.1} parent=1 // pred_check_branch
      %45 = sbr.rel (0) target = $region17
    $region16: #{tpu_custom_call.1} parent=1 // pred_region
      %46 = dma.done [#allocation4], 256
    $region17: #{tpu_custom_call.1} parent=1 // pred_fallthru
      _
    %47 = vsyncpa [#allocation3], 1
    %48 = vsyncpa [#allocation4], 1

</llo_original>
